<compile_context>
chip_gen: v7x
topology: tpu7x:2x2x1
jax: 0.10.0
libtpu: 0.0.40
codegen_flags: <defaults>
</compile_context>

<pallas_src>
import functools

import jax
import jax.numpy as jnp
from jax import lax
from jax.experimental import pallas as pl
from jax.experimental.pallas import tpu as pltpu

_A = -0.75  # PyTorch's bicubic convolution coefficient


def _cubic_near(d):
    # weight for |d| <= 1
    return ((_A + 2.0) * d - (_A + 3.0)) * d * d + 1.0


def _cubic_far(d):
    # weight for 1 < |d| < 2
    return ((_A * d - 5.0 * _A) * d + 8.0 * _A) * d - 4.0 * _A


def _taps_T(coord, size):
    """Transposed 1-D bicubic tap matrix, shape (size, n), f32.

    coord: (1, n) f32 unnormalized source coordinate. Entry [s, k] is the cubic
    weight of integer tap s for point k, computed directly from the distance
    |s - coord_k| (no floor / integer compares / scatter)."""
    n = coord.shape[-1]
    s = lax.broadcasted_iota(jnp.int32, (size, n), 0).astype(jnp.float32)
    d = jnp.abs(s - coord)
    return jnp.where(d < 1.0, _cubic_near(d),
                     jnp.where(d < 2.0, _cubic_far(d), 0.0))


def _interp_kernel(pos_ref, x_ref, o_ref, *, H_in, W_in, W_pad, H_norm, W_norm):
    pos = pos_ref[0].astype(jnp.float32)        # (2, TN): row 0 = x, row 1 = y
    x2d = x_ref[0]                              # (C, H_in * W_pad), MXU dtype
    TN = pos.shape[1]

    # module normgrid -> [-1, 1] with (W-1, H-1), then align_corners=False unnormalize
    gx = 2.0 * pos[0:1, :] / (W_norm - 1.0) - 1.0
    gy = 2.0 * pos[1:2, :] / (H_norm - 1.0) - 1.0
    ix = ((gx + 1.0) * W_in - 1.0) * 0.5        # (1, TN)
    iy = ((gy + 1.0) * H_in - 1.0) * 0.5        # (1, TN)

    # Separable taps built in f32, cast once to the MXU operand dtype.
    wx = _taps_T(ix, W_pad).astype(x2d.dtype)   # (W_pad, TN)
    wy = _taps_T(iy, H_in).astype(x2d.dtype)    # (H_in,  TN)

    # Fused [H*W_pad, TN] tap matrix; the reshape is layout-preserving because
    # W_pad is sublane-aligned for this dtype and TN is a multiple of 128.
    fused = (wy[:, None, :] * wx[None, :, :]).reshape(H_in * W_pad, TN)

    # One MXU matmul with a deep contraction (K = H*W_pad), f32 accumulation.
    out = jnp.dot(x2d, fused, preferred_element_type=jnp.float32)   # (C, TN)
    o_ref[0] = out.astype(o_ref.dtype)


def _vmem_capacity_bytes():
    try:
        return int(pltpu.get_tpu_info().vmem_capacity_bytes)
    except Exception:
        return 64 * 2**20   # conservative (v7x-sized) fallback


def interpolate_sparse_2d(x_nchw, pos, H, W, *, mxu_dtype=None, tn=None):
    """x_nchw: [B, C, H_in, W_in]; pos: [B, N, 2] (x, y) coords in the original
    HxW frame. Returns [B, N, C] in x_nchw.dtype."""
    B, C, H_in, W_in = x_nchw.shape
    N = pos.shape[1]
    out_dtype = x_nchw.dtype
    out_isz = jnp.dtype(out_dtype).itemsize

    # bf16 MXU operands for f32 features (f32 accumulation is kept); override
    # with mxu_dtype=jnp.float32 for bit-closer-to-PyTorch weights.
    if mxu_dtype is None:
        mxu_dtype = jnp.bfloat16 if out_dtype == jnp.float32 else out_dtype
    mxu_isz = jnp.dtype(mxu_dtype).itemsize

    # Pad W to the sublane-packing width of the MXU dtype (8 for f32, 16 for bf16)
    # so the in-kernel (H, W_pad, TN) -> (H*W_pad, TN) reshape is layout-preserving.
    # Zero-padded columns make any extra taps contribute nothing (zeros padding).
    w_align = max(8, 8 * 4 // mxu_isz)
    W_pad = -(-W_in // w_align) * w_align
    HW = H_in * W_pad

    x_flat = x_nchw.astype(mxu_dtype)
    if W_pad != W_in:
        x_flat = jnp.pad(x_flat, ((0, 0), (0, 0), (0, 0), (0, W_pad - W_in)))
    x_flat = x_flat.reshape(B, C, HW)           # lane-dense LHS, no in-kernel reshape

    # ---- per-generation VMEM budget and N-tile selection (tn multiple of 128) ----
    cap = _vmem_capacity_bytes()
    # ~100 MiB usable on 128 MiB parts (v5e/v6e), ~48 MiB on 64 MiB parts (v7x).
    limit_cap = cap - (28 << 20) if cap >= (96 << 20) else max(cap // 2, cap - (16 << 20))
    budget = limit_cap - (4 << 20)

    def vmem_need(tn_):
        x_blk = C * HW * mxu_isz                      # double-buffered input block
        pos_blk = 2 * tn_ * 4
        out_blk = C * tn_ * out_isz
        taps = (H_in + W_pad) * tn_ * (4 + mxu_isz)   # f32 builds + dtype casts
        fused = HW * tn_ * mxu_isz                    # fused tap matrix
        acc = C * tn_ * 4                             # matmul accumulator
        return 2 * (x_blk + pos_blk + out_blk) + taps + fused + acc

    n_units = -(-N // 128)
    if tn is None:
        tn = 128
        for cand in (1024, 512, 256, 128):
            if vmem_need(cand) <= budget:
                tn = cand
                break
        tn = min(tn, n_units * 128)
        # keep both v7x TensorCores busy: >= 2 grid steps whenever N allows a split
        if B * (-(-N // tn)) < 2 and n_units >= 2:
            tn = ((n_units + 1) // 2) * 128
    else:
        tn = max(128, -(-int(tn) // 128) * 128)       # force lane-dense multiple of 128
    n_tiles = -(-N // tn)
    n_pad = n_tiles * tn

    # Positions as (B, 2, N) so N sits on lanes inside the kernel (tiny array).
    pos_t = jnp.transpose(pos, (0, 2, 1)).astype(jnp.float32)
    if n_pad != N:
        pos_t = jnp.pad(pos_t, ((0, 0), (0, 0), (0, n_pad - N)))

    vneed = vmem_need(tn)
    vmem_limit = max(16 << 20, int(vneed * 1.25) + (2 << 20))
    vmem_limit = int(min(vmem_limit, limit_cap if vneed <= budget else cap))

    kernel = functools.partial(
        _interp_kernel, H_in=H_in, W_in=W_in, W_pad=W_pad,
        H_norm=float(H), W_norm=float(W))

    grid_steps = B * n_tiles
    flops = grid_steps * (2 * C * HW * tn + HW * tn + 16 * (H_in + W_pad) * tn)
    bytes_accessed = (B * C * HW * mxu_isz + B * 2 * n_pad * 4
                      + B * C * n_pad * out_isz)

    out_cn = pl.pallas_call(
        kernel,
        out_shape=jax.ShapeDtypeStruct((B, C, n_pad), out_dtype),
        grid_spec=pltpu.PrefetchScalarGridSpec(
            num_scalar_prefetch=0,
            grid=(B, n_tiles),
            in_specs=[
                pl.BlockSpec((1, 2, tn), lambda b, n: (b, 0, n)),
                # Same feature block across N tiles -> stays VMEM-resident, no re-DMA.
                pl.BlockSpec((1, C, HW), lambda b, n: (b, 0, 0)),
            ],
            out_specs=pl.BlockSpec((1, C, tn), lambda b, n: (b, 0, n)),
        ),
        compiler_params=pltpu.CompilerParams(
            dimension_semantics=("parallel", "parallel"),
            vmem_limit_bytes=vmem_limit),
        cost_estimate=pl.CostEstimate(
            flops=int(flops), transcendentals=0,
            bytes_accessed=int(bytes_accessed)),
    )(pos_t, x_flat)

    # Kernel output is lane-dense [B, C, N]; module contract is [B, N, C] (small transpose).
    return jnp.transpose(out_cn[:, :, :N], (0, 2, 1))


def _reference(x_nchw, pos, H, W):
    """Pure-JAX f32 reference (direct 4x4 gather, zeros padding, align_corners=False)."""
    B, C, H_in, W_in = x_nchw.shape
    x_nhwc = jnp.transpose(x_nchw, (0, 2, 3, 1)).astype(jnp.float32)
    gx = 2.0 * pos[..., 0] / (W - 1.0) - 1.0
    gy = 2.0 * pos[..., 1] / (H - 1.0) - 1.0
    ix = ((gx + 1.0) * W_in - 1.0) * 0.5
    iy = ((gy + 1.0) * H_in - 1.0) * 0.5
    ix0 = jnp.floor(ix)
    iy0 = jnp.floor(iy)

    def cubic_w(d):
        d = jnp.abs(d)
        return jnp.where(d < 1.0, _cubic_near(d), jnp.where(d < 2.0, _cubic_far(d), 0.0))

    bidx = jnp.arange(B)[:, None]
    out = jnp.zeros((B, pos.shape[1], C), jnp.float32)
    for i in range(4):
        py = iy0 - 1.0 + i
        vy = (py >= 0) & (py <= H_in - 1)
        wy = cubic_w(py - iy)
        for j in range(4):
            px = ix0 - 1.0 + j
            vx = (px >= 0) & (px <= W_in - 1)
            wx = cubic_w(px - ix)
            pyc = jnp.clip(py, 0, H_in - 1).astype(jnp.int32)
            pxc = jnp.clip(px, 0, W_in - 1).astype(jnp.int32)
            vals = x_nhwc[bidx, pyc, pxc]                 # (B, N, C)
            w = jnp.where(vx & vy, wy * wx, 0.0)
            out = out + w[..., None] * vals
    return out.astype(x_nchw.dtype)


if __name__ == "__main__":
    B, C, H, W, N = 2, 4, 16, 16, 8
    key = jax.random.PRNGKey(0)
    kx, kp = jax.random.split(key)
    x = jax.random.normal(kx, (B, C, H, W), dtype=jnp.float32)
    # sparse 2D positions in pixel coords of the original HxW image, (x, y) order
    pos = jax.random.uniform(kp, (B, N, 2), dtype=jnp.float32,
                             minval=0.0, maxval=float(W - 1))
    # Exercise the zeros-padding (out-of-bounds) path and exactly-integer source coords.
    pos = pos.at[0, 0].set(jnp.array([-3.0, 5.0], jnp.float32))          # far OOB (x)
    pos = pos.at[0, 1].set(jnp.array([2.34375, 7.03125], jnp.float32))   # integer ix/iy
    pos = pos.at[1, 0].set(jnp.array([W - 0.5, H + 2.5], jnp.float32))   # OOB high (y)
    pos = pos.at[1, 1].set(jnp.array([0.25, H - 1.0], jnp.float32))      # near left edge

    out = interpolate_sparse_2d(x, pos, H, W)        # default bf16-MXU fast path
    out = jax.block_until_ready(out)

    ref = _reference(x, pos, H, W)
    assert out.shape == (B, N, C), out.shape
    # bf16 MXU operands (features + tap weights) vs f32 reference -> widened tolerance.
    err = float(jnp.max(jnp.abs(out.astype(jnp.float32) - ref.astype(jnp.float32))))
    assert jnp.allclose(out, ref, atol=5e-2, rtol=5e-2), f"kernel != reference, max err {err}"
    print("KERNEL_OK")
</pallas_src>

<mosaic_0001>
module attributes {stable_mosaic.version = 11 : i64} {
  func.func @_interp_kernel(%arg0: i32, %arg1: i32, %arg2: memref<1x2x128xf32, #tpu.memory_space<vmem>>, %arg3: memref<1x4x256xbf16, #tpu.memory_space<vmem>>, %arg4: memref<1x4x128xf32, #tpu.memory_space<vmem>>) attributes {dimension_semantics = [#tpu.dimension_semantics<parallel>, #tpu.dimension_semantics<parallel>], iteration_bounds = array<i64: 2, 1>, scalar_prefetch = 0 : i64, scratch_operands = 0 : i64, tpu.core_type = #tpu.core_type<tc>, window_params = [{transform_indices = @transform_0, window_bounds = array<i64: 1, 2, 128>}, {transform_indices = @transform_1, window_bounds = array<i64: 1, 4, 256>}, {transform_indices = @transform_2, window_bounds = array<i64: 1, 4, 128>}]} {
    %c0 = arith.constant 0 : index
    %c0_0 = arith.constant 0 : index
    %c0_1 = arith.constant 0 : index
    %0 = vector.load %arg2[%c0, %c0_0, %c0_1] : memref<1x2x128xf32, #tpu.memory_space<vmem>>, vector<1x2x128xf32>
    %1 = vector.shape_cast %0 : vector<1x2x128xf32> to vector<2x128xf32>
    %c0_2 = arith.constant 0 : index
    %c0_3 = arith.constant 0 : index
    %c0_4 = arith.constant 0 : index
    %2 = vector.load %arg3[%c0_2, %c0_3, %c0_4] : memref<1x4x256xbf16, #tpu.memory_space<vmem>>, vector<1x4x256xbf16>
    %3 = vector.shape_cast %2 : vector<1x4x256xbf16> to vector<4x256xbf16>
    %4 = vector.extract_strided_slice %1 {offsets = [0, 0], sizes = [1, 128], strides = [1, 1]} : vector<2x128xf32> to vector<1x128xf32>
    %cst = arith.constant 2.000000e+00 : f32
    %5 = vector.broadcast %cst : f32 to vector<1x128xf32>
    %6 = arith.mulf %5, %4 : vector<1x128xf32>
    %cst_5 = arith.constant 1.500000e+01 : f32
    %7 = vector.broadcast %cst_5 : f32 to vector<1x128xf32>
    %8 = arith.divf %6, %7 : vector<1x128xf32>
    %cst_6 = arith.constant 1.000000e+00 : f32
    %9 = vector.broadcast %cst_6 : f32 to vector<1x128xf32>
    %10 = arith.subf %8, %9 : vector<1x128xf32>
    %11 = vector.extract_strided_slice %1 {offsets = [1, 0], sizes = [1, 128], strides = [1, 1]} : vector<2x128xf32> to vector<1x128xf32>
    %cst_7 = arith.constant 2.000000e+00 : f32
    %12 = vector.broadcast %cst_7 : f32 to vector<1x128xf32>
    %13 = arith.mulf %12, %11 : vector<1x128xf32>
    %cst_8 = arith.constant 1.500000e+01 : f32
    %14 = vector.broadcast %cst_8 : f32 to vector<1x128xf32>
    %15 = arith.divf %13, %14 : vector<1x128xf32>
    %cst_9 = arith.constant 1.000000e+00 : f32
    %16 = vector.broadcast %cst_9 : f32 to vector<1x128xf32>
    %17 = arith.subf %15, %16 : vector<1x128xf32>
    %cst_10 = arith.constant 1.000000e+00 : f32
    %18 = vector.broadcast %cst_10 : f32 to vector<1x128xf32>
    %19 = arith.addf %10, %18 : vector<1x128xf32>
    %cst_11 = arith.constant 1.600000e+01 : f32
    %20 = vector.broadcast %cst_11 : f32 to vector<1x128xf32>
    %21 = arith.mulf %19, %20 : vector<1x128xf32>
    %cst_12 = arith.constant 1.000000e+00 : f32
    %22 = vector.broadcast %cst_12 : f32 to vector<1x128xf32>
    %23 = arith.subf %21, %22 : vector<1x128xf32>
    %cst_13 = arith.constant 5.000000e-01 : f32
    %24 = vector.broadcast %cst_13 : f32 to vector<1x128xf32>
    %25 = arith.mulf %23, %24 : vector<1x128xf32>
    %cst_14 = arith.constant 1.000000e+00 : f32
    %26 = vector.broadcast %cst_14 : f32 to vector<1x128xf32>
    %27 = arith.addf %17, %26 : vector<1x128xf32>
    %cst_15 = arith.constant 1.600000e+01 : f32
    %28 = vector.broadcast %cst_15 : f32 to vector<1x128xf32>
    %29 = arith.mulf %27, %28 : vector<1x128xf32>
    %cst_16 = arith.constant 1.000000e+00 : f32
    %30 = vector.broadcast %cst_16 : f32 to vector<1x128xf32>
    %31 = arith.subf %29, %30 : vector<1x128xf32>
    %cst_17 = arith.constant 5.000000e-01 : f32
    %32 = vector.broadcast %cst_17 : f32 to vector<1x128xf32>
    %33 = arith.mulf %31, %32 : vector<1x128xf32>
    %34 = tpu.iota {dimensions = array<i32: 0>} : vector<16x128xi32>
    %35 = arith.sitofp %34 : vector<16x128xi32> to vector<16x128xf32>
    %36 = vector.broadcast %25 : vector<1x128xf32> to vector<16x128xf32>
    %37 = arith.subf %35, %36 : vector<16x128xf32>
    %38 = math.absf %37 : vector<16x128xf32>
    %cst_18 = arith.constant 1.000000e+00 : f32
    %39 = vector.broadcast %cst_18 : f32 to vector<16x128xf32>
    %40 = arith.cmpf olt, %38, %39 : vector<16x128xf32>
    %cst_19 = arith.constant 1.250000e+00 : f32
    %41 = vector.broadcast %cst_19 : f32 to vector<16x128xf32>
    %42 = arith.mulf %41, %38 : vector<16x128xf32>
    %cst_20 = arith.constant 2.250000e+00 : f32
    %43 = vector.broadcast %cst_20 : f32 to vector<16x128xf32>
    %44 = arith.subf %42, %43 : vector<16x128xf32>
    %45 = arith.mulf %44, %38 : vector<16x128xf32>
    %46 = arith.mulf %45, %38 : vector<16x128xf32>
    %cst_21 = arith.constant 1.000000e+00 : f32
    %47 = vector.broadcast %cst_21 : f32 to vector<16x128xf32>
    %48 = arith.addf %46, %47 : vector<16x128xf32>
    %cst_22 = arith.constant 2.000000e+00 : f32
    %49 = vector.broadcast %cst_22 : f32 to vector<16x128xf32>
    %50 = arith.cmpf olt, %38, %49 : vector<16x128xf32>
    %cst_23 = arith.constant -7.500000e-01 : f32
    %51 = vector.broadcast %cst_23 : f32 to vector<16x128xf32>
    %52 = arith.mulf %51, %38 : vector<16x128xf32>
    %cst_24 = arith.constant -3.750000e+00 : f32
    %53 = vector.broadcast %cst_24 : f32 to vector<16x128xf32>
    %54 = arith.subf %52, %53 : vector<16x128xf32>
    %55 = arith.mulf %54, %38 : vector<16x128xf32>
    %cst_25 = arith.constant -6.000000e+00 : f32
    %56 = vector.broadcast %cst_25 : f32 to vector<16x128xf32>
    %57 = arith.addf %55, %56 : vector<16x128xf32>
    %58 = arith.mulf %57, %38 : vector<16x128xf32>
    %cst_26 = arith.constant -3.000000e+00 : f32
    %59 = vector.broadcast %cst_26 : f32 to vector<16x128xf32>
    %60 = arith.subf %58, %59 : vector<16x128xf32>
    %cst_27 = arith.constant 0.000000e+00 : f32
    %61 = vector.broadcast %cst_27 : f32 to vector<16x128xf32>
    %62 = arith.select %50, %60, %61 : vector<16x128xi1>, vector<16x128xf32>
    %63 = arith.select %40, %48, %62 : vector<16x128xi1>, vector<16x128xf32>
    %64 = arith.truncf %63 : vector<16x128xf32> to vector<16x128xbf16>
    %65 = tpu.iota {dimensions = array<i32: 0>} : vector<16x128xi32>
    %66 = arith.sitofp %65 : vector<16x128xi32> to vector<16x128xf32>
    %67 = vector.broadcast %33 : vector<1x128xf32> to vector<16x128xf32>
    %68 = arith.subf %66, %67 : vector<16x128xf32>
    %69 = math.absf %68 : vector<16x128xf32>
    %cst_28 = arith.constant 1.000000e+00 : f32
    %70 = vector.broadcast %cst_28 : f32 to vector<16x128xf32>
    %71 = arith.cmpf olt, %69, %70 : vector<16x128xf32>
    %cst_29 = arith.constant 1.250000e+00 : f32
    %72 = vector.broadcast %cst_29 : f32 to vector<16x128xf32>
    %73 = arith.mulf %72, %69 : vector<16x128xf32>
    %cst_30 = arith.constant 2.250000e+00 : f32
    %74 = vector.broadcast %cst_30 : f32 to vector<16x128xf32>
    %75 = arith.subf %73, %74 : vector<16x128xf32>
    %76 = arith.mulf %75, %69 : vector<16x128xf32>
    %77 = arith.mulf %76, %69 : vector<16x128xf32>
    %cst_31 = arith.constant 1.000000e+00 : f32
    %78 = vector.broadcast %cst_31 : f32 to vector<16x128xf32>
    %79 = arith.addf %77, %78 : vector<16x128xf32>
    %cst_32 = arith.constant 2.000000e+00 : f32
    %80 = vector.broadcast %cst_32 : f32 to vector<16x128xf32>
    %81 = arith.cmpf olt, %69, %80 : vector<16x128xf32>
    %cst_33 = arith.constant -7.500000e-01 : f32
    %82 = vector.broadcast %cst_33 : f32 to vector<16x128xf32>
    %83 = arith.mulf %82, %69 : vector<16x128xf32>
    %cst_34 = arith.constant -3.750000e+00 : f32
    %84 = vector.broadcast %cst_34 : f32 to vector<16x128xf32>
    %85 = arith.subf %83, %84 : vector<16x128xf32>
    %86 = arith.mulf %85, %69 : vector<16x128xf32>
    %cst_35 = arith.constant -6.000000e+00 : f32
    %87 = vector.broadcast %cst_35 : f32 to vector<16x128xf32>
    %88 = arith.addf %86, %87 : vector<16x128xf32>
    %89 = arith.mulf %88, %69 : vector<16x128xf32>
    %cst_36 = arith.constant -3.000000e+00 : f32
    %90 = vector.broadcast %cst_36 : f32 to vector<16x128xf32>
    %91 = arith.subf %89, %90 : vector<16x128xf32>
    %cst_37 = arith.constant 0.000000e+00 : f32
    %92 = vector.broadcast %cst_37 : f32 to vector<16x128xf32>
    %93 = arith.select %81, %91, %92 : vector<16x128xi1>, vector<16x128xf32>
    %94 = arith.select %71, %79, %93 : vector<16x128xi1>, vector<16x128xf32>
    %95 = arith.truncf %94 : vector<16x128xf32> to vector<16x128xbf16>
    %96 = vector.shape_cast %95 : vector<16x128xbf16> to vector<16x1x128xbf16>
    %97 = vector.shape_cast %64 : vector<16x128xbf16> to vector<1x16x128xbf16>
    %98 = vector.broadcast %96 : vector<16x1x128xbf16> to vector<16x16x128xbf16>
    %99 = vector.broadcast %97 : vector<1x16x128xbf16> to vector<16x16x128xbf16>
    %100 = arith.mulf %98, %99 : vector<16x16x128xbf16>
    %101 = vector.shape_cast %100 : vector<16x16x128xbf16> to vector<256x128xbf16>
    %cst_38 = arith.constant dense<0.000000e+00> : vector<4x128xf32>
    %102 = tpu.matmul %3, %101, %cst_38 {dimension_numbers = #tpu.dot_dimension_numbers<[1], [0], [0], [1], [0, 0, 1, 1], [], []>} : vector<4x256xbf16>, vector<256x128xbf16>, vector<4x128xf32> -> vector<4x128xf32>
    %c0_39 = arith.constant 0 : index
    %c0_40 = arith.constant 0 : index
    %c0_41 = arith.constant 0 : index
    %103 = vector.load %arg4[%c0_39, %c0_40, %c0_41] : memref<1x4x128xf32, #tpu.memory_space<vmem>>, vector<1x4x128xf32>
    %104 = vector.shape_cast %103 : vector<1x4x128xf32> to vector<4x128xf32>
    %105 = vector.shape_cast %102 : vector<4x128xf32> to vector<1x4x128xf32>
    tpu.vector_store %arg4[%c0_39, %c0_40, %c0_41], %105 {strides = array<i32>} : memref<1x4x128xf32, #tpu.memory_space<vmem>>, vector<1x4x128xf32>,
    return
  }
  func.func @transform_0(%arg0: i32, %arg1: i32) -> (i32, i32, i32) {
    %c0_i32 = arith.constant 0 : i32
    %c0_i32_0 = arith.constant 0 : i32
    return %arg0, %c0_i32, %arg1 : i32, i32, i32
  }
  func.func @transform_1(%arg0: i32, %arg1: i32) -> (i32, i32, i32) {
    %c0_i32 = arith.constant 0 : i32
    %c0_i32_0 = arith.constant 0 : i32
    %c0_i32_1 = arith.constant 0 : i32
    return %arg0, %c0_i32, %c0_i32_0 : i32, i32, i32
  }
  func.func @transform_2(%arg0: i32, %arg1: i32) -> (i32, i32, i32) {
    %c0_i32 = arith.constant 0 : i32
    %c0_i32_0 = arith.constant 0 : i32
    return %arg0, %c0_i32, %arg1 : i32, i32, i32
  }
}

</mosaic_0001>

<llo_original>
// kernel: tpu_custom_call.1
$region0: #{tpu_custom_call.1}
  #allocation0 [shape = 'u32[]', space=smem, size = 0x4, offset = 0x4, fixed_abs, tag = 'smem constant byte address 0x4 - core index']
  #allocation1 [shape = 'u32[144,128]{1,0:T(1,128)}', space=vmem, size = 0x12000, scoped, tag = 'internal scratch']
  %s0 = inlined_call_operand.hbm [shape: f32[2,2,128], index: 0, kind: input, shape index: {}]
  %s1 = inlined_call_operand.hbm [shape: bf16[2,4,256], index: 1, kind: input, shape index: {}]
  %s2 = inlined_call_operand.hbm [shape: f32[2,4,128], index: 2, kind: output, shape index: {}]
  %s3 = sld [smem:[#allocation0]]
  $region49: #{tpu_custom_call.1} parent=0
    _
  %s5 = ssub.s32 1, %s3
  %s6 = scalar_select 0, %s5, %s3
  $region1: #{tpu_custom_call.1} parent=0
    #allocation2 [shape = 'u8[2048]{0}', space=vmem, size = 0x800, scoped, tag = 'input window, operand 0']
    #allocation3 [shape = 's32[2]{0}', space=sflag, size = 0x8, scoped, tag = 'scoped memory for tpu_custom_call.1']
    #allocation4 [shape = 's32[2]{0}', space=sflag, size = 0x8, scoped, tag = 'scoped memory for tpu_custom_call.1']
    #allocation5 [shape = 'u8[4096]{0}', space=vmem, size = 0x1000, scoped, tag = 'input window, operand 1']
    #allocation6 [shape = 's32[2]{0}', space=sflag, size = 0x8, scoped, tag = 'scoped memory for tpu_custom_call.1']
    #allocation7 [shape = 'u8[4096]{0}', space=vmem, size = 0x1000, scoped, tag = 'output window, operand 0']
    %7 = vsyncpa [#allocation3], 0
    %s8 = scalar_lea.sflag [#allocation3], 1
    %9 = vsyncpa %s8, 0
    %10 = vsyncpa [#allocation6], 0
    %s11 = scalar_lea.sflag [#allocation6], 1
    %12 = vsyncpa %s11, 0
    %13 = vsyncpa [#allocation4], 0
    %s14 = scalar_lea.sflag [#allocation4], 1
    %15 = vsyncpa %s14, 0
    loop: start=0, step=1, limit=4
    $region2: #{tpu_custom_call.1} parent=1 // loop_pre_header
      _
    $region3: #{tpu_custom_call.1} parent=1 // loop_header
      %s17 = sphi 0, %s21
      %p18 = scmp.ge.s32.totalorder %s17, 4
      %s24 = sphi 0, %s36
      %s25 = sphi 0, %s32
      %s26 = sphi 0, %s24
      %s27 = sphi 0, %s25
      %s28 = sphi 0, %s26
      %s29 = sphi 0, %s27
      %s41 = sphi 0, %s43
      %s44 = sphi 0, %s41
      %s45 = sphi 0, %s44
      %s61 = sphi 0, %s45
      %s67 = sphi 0, %s69
      %s70 = sphi 0, %s67
      %s71 = sphi 0, %s70
      %s87 = sphi 0, %s71
      %s95 = sphi 0, %s97
      %s98 = sphi 0, %s95
      %s99 = sphi 0, %s98
      %s115 = sphi 0, %s99
    $region4: #{tpu_custom_call.1} parent=1 // loop_header_branch
      %20 = sbr.rel (%p18) target = $region8
    $region5: #{tpu_custom_call.1} parent=1 // loop_body
      %s22 = ssub.s32 %s17, 1
      %s23 = ssub.s32 %s17, 2
      %s30 = sadd.s32 1, %s25
      %p31 = scmp.ge.s32.totalorder %s30, 1
      %s32 = scalar_select %p31, 0, %s30
      %s33 = sadd.s32 1, %s24
      %s34 = scalar_select %p31, %s33, %s24
      %p35 = scmp.ge.s32.totalorder %s34, 2
      %s36 = scalar_select %p35, 0, %s34
      %s37 = ssub.s32 %s24, %s36
      %s38 = ssub.s32 %s25, %s32
      %s39 = sor.u32 %s37, %s38
      %p40 = scmp.eq.s32.totalorder %s39, 0
      %s42 = sadd.s32 %s41, 1
      %s43 = scalar_select %p40, %s41, %s42
      %p46 = pneg %p40
      %p47 = scmp.eq.s32.totalorder %s17, 1
      %p48 = por %p46, %p47
      %p49 = scmp.ne.s32.totalorder %s41, %s44
      %p50 = scmp.eq.s32.totalorder %s17, 0
      %p51 = por %p49, %p50
      %p52 = scmp.ne.s32.totalorder %s41, %s44
      %p53 = scmp.eq.s32.totalorder %s22, 1
      %p54 = por %p52, %p53
      %p55 = scmp.ne.s32.totalorder %s44, %s45
      %p56 = scmp.eq.s32.totalorder %s22, 0
      %p57 = por %p55, %p56
      %p58 = scmp.ne.s32.totalorder %s44, %s45
      %p59 = scmp.eq.s32.totalorder %s23, 1
      %p60 = por %p58, %p59
      %p62 = scmp.ne.s32.totalorder %s45, %s61
      %p63 = scmp.eq.s32.totalorder %s23, 0
      %p64 = por %p62, %p63
      %s65 = ssub.s32 %s24, %s36
      %p66 = scmp.eq.s32.totalorder %s65, 0
      %s68 = sadd.s32 %s67, 1
      %s69 = scalar_select %p66, %s67, %s68
      %p72 = pneg %p66
      %p73 = scmp.eq.s32.totalorder %s17, 1
      %p74 = por %p72, %p73
      %p75 = scmp.ne.s32.totalorder %s67, %s70
      %p76 = scmp.eq.s32.totalorder %s17, 0
      %p77 = por %p75, %p76
      %p78 = scmp.ne.s32.totalorder %s67, %s70
      %p79 = scmp.eq.s32.totalorder %s22, 1
      %p80 = por %p78, %p79
      %p81 = scmp.ne.s32.totalorder %s70, %s71
      %p82 = scmp.eq.s32.totalorder %s22, 0
      %p83 = por %p81, %p82
      %p84 = scmp.ne.s32.totalorder %s70, %s71
      %p85 = scmp.eq.s32.totalorder %s23, 1
      %p86 = por %p84, %p85
      %p88 = scmp.ne.s32.totalorder %s71, %s87
      %p89 = scmp.eq.s32.totalorder %s23, 0
      %p90 = por %p88, %p89
      %s91 = ssub.s32 %s24, %s36
      %s92 = ssub.s32 %s25, %s32
      %s93 = sor.u32 %s91, %s92
      %p94 = scmp.eq.s32.totalorder %s93, 0
      %s96 = sadd.s32 %s95, 1
      %s97 = scalar_select %p94, %s95, %s96
      %p100 = pneg %p94
      %p101 = scmp.eq.s32.totalorder %s17, 1
      %p102 = por %p100, %p101
      %p103 = scmp.ne.s32.totalorder %s95, %s98
      %p104 = scmp.eq.s32.totalorder %s17, 0
      %p105 = por %p103, %p104
      %p106 = scmp.ne.s32.totalorder %s95, %s98
      %p107 = scmp.eq.s32.totalorder %s22, 1
      %p108 = por %p106, %p107
      %p109 = scmp.ne.s32.totalorder %s98, %s99
      %p110 = scmp.eq.s32.totalorder %s22, 0
      %p111 = por %p109, %p110
      %p112 = scmp.ne.s32.totalorder %s98, %s99
      %p113 = scmp.eq.s32.totalorder %s23, 1
      %p114 = por %p112, %p113
      %p116 = scmp.ne.s32.totalorder %s99, %s115
      %p117 = scmp.eq.s32.totalorder %s23, 0
      %p118 = por %p116, %p117
      %p119 = scmp.le.s32.totalorder 1, %s17
      %p120 = scmp.lt.s32.totalorder %s17, 3
      %p121 = pnand %p119, %p120
      %p122 = pneg %p121
      // Predicated region
      $region9: #{tpu_custom_call.1} parent=5 // pred_check
        _
      $region10: #{tpu_custom_call.1} parent=5 // pred_check_branch
        %124 = sbr.rel (%p121) target = $region12
      $region11: #{tpu_custom_call.1} parent=5 // pred_region
        %s125 = ssub.s32 %s17, 1
      $region12: #{tpu_custom_call.1} parent=5 // pred_fallthru
        _
      %p126 = scmp.lt.s32.totalorder %s17, 2
      // Predicated region
      $region13: #{tpu_custom_call.1} parent=5 // pred_check
        %p127 = pneg %p126
      $region14: #{tpu_custom_call.1} parent=5 // pred_check_branch
        %129 = sbr.rel (%p127) target = $region16
      $region15: #{tpu_custom_call.1} parent=5 // pred_region
        // Predicated region
        $region17: #{tpu_custom_call.1} parent=15 // pred_check
          %p130 = pneg %p51
        $region18: #{tpu_custom_call.1} parent=15 // pred_check_branch
          %132 = sbr.rel (%p130) target = $region20
        $region19: #{tpu_custom_call.1} parent=15 // pred_region
          %s133 = sand.u32 %s41, 1
          %s134 = scalar_lea.sflag [#allocation3], %s133
          %s135 = sand.u32 %s41, 1
          %s136 = smul.addr %s135, 2
          %s137 = scalar_lea.vmem [#allocation2], %s136
          %s139 = ssub.s32 32, 32
          %140 = vsyncadd %s134, %s139
          %s141 = sadd.s32 %s25, %s24
          %s142 = smul.addr %s141, 32
          %s143 = scalar_lea.hbm %s0, %s142
          %s145 = sshll.u32 %s137, 4
          %s146 = int_to_ptr.vmem [resolvable:$true] %s145
          %148 = dma.hbm_to_vmem [thread:$0]  %s143, 32, %s146, %s134
        $region20: #{tpu_custom_call.1} parent=15 // pred_fallthru
          _
        // Predicated region
        $region21: #{tpu_custom_call.1} parent=15 // pred_check
          %p149 = pneg %p77
        $region22: #{tpu_custom_call.1} parent=15 // pred_check_branch
          %151 = sbr.rel (%p149) target = $region24
        $region23: #{tpu_custom_call.1} parent=15 // pred_region
          %s152 = sand.u32 %s67, 1
          %s153 = scalar_lea.sflag [#allocation6], %s152
          %s154 = sand.u32 %s67, 1
          %s155 = smul.addr %s154, 4
          %s156 = scalar_lea.vmem [#allocation5], %s155
          %s158 = ssub.s32 64, 64
          %159 = vsyncadd %s153, %s158
          %s160 = smul.addr %s24, 2
          %s161 = smul.addr %s160, 32
          %s162 = scalar_lea.hbm %s1, %s161
          %s164 = sshll.u32 %s156, 4
          %s165 = int_to_ptr.vmem [resolvable:$true] %s164
          %167 = dma.hbm_to_vmem [thread:$0]  %s162, 64, %s165, %s153
        $region24: #{tpu_custom_call.1} parent=15 // pred_fallthru
          _
      $region16: #{tpu_custom_call.1} parent=5 // pred_fallthru
        _
      %p168 = scmp.le.s32.totalorder 1, %s17
      %p169 = scmp.lt.s32.totalorder %s17, 3
      %p170 = pnand %p168, %p169
      %p171 = pneg %p170
      // Predicated region
      $region25: #{tpu_custom_call.1} parent=5 // pred_check
        _
      $region26: #{tpu_custom_call.1} parent=5 // pred_check_branch
        %173 = sbr.rel (%p170) target = $region28
      $region27: #{tpu_custom_call.1} parent=5 // pred_region
        %s174 = ssub.s32 %s17, 1
        %s175 = sand.u32 %s44, 1
        %s176 = scalar_lea.sflag [#allocation3], %s175
        %s177 = sand.u32 %s44, 1
        %s178 = smul.addr %s177, 2
        %s179 = scalar_lea.vmem [#allocation2], %s178
        // Predicated region
        $region29: #{tpu_custom_call.1} parent=27 // pred_check
          %p180 = pneg %p57
        $region30: #{tpu_custom_call.1} parent=27 // pred_check_branch
          %182 = sbr.rel (%p180) target = $region32
        $region31: #{tpu_custom_call.1} parent=27 // pred_region
          %183 = dma.done %s176, 32
        $region32: #{tpu_custom_call.1} parent=27 // pred_fallthru
          _
        %s184 = sand.u32 %s70, 1
        %s185 = scalar_lea.sflag [#allocation6], %s184
        %s186 = sand.u32 %s70, 1
        %s187 = smul.addr %s186, 4
        %s188 = scalar_lea.vmem [#allocation5], %s187
        // Predicated region
        $region33: #{tpu_custom_call.1} parent=27 // pred_check
          %p189 = pneg %p83
        $region34: #{tpu_custom_call.1} parent=27 // pred_check_branch
          %191 = sbr.rel (%p189) target = $region36
        $region35: #{tpu_custom_call.1} parent=27 // pred_region
          %192 = dma.done %s185, 64
        $region36: #{tpu_custom_call.1} parent=27 // pred_fallthru
          _
        %s193 = sand.u32 %s44, 1
        %s194 = scalar_lea.sflag [#allocation3], %s193
        %s195 = sand.u32 %s44, 1
        %s196 = smul.addr %s195, 2
        %s197 = scalar_lea.vmem [#allocation2], %s196
        %p198 = pneg %p57
        %p199 = pneg %p54
        %s200 = sand.u32 %s70, 1
        %s201 = scalar_lea.sflag [#allocation6], %s200
        %s202 = sand.u32 %s70, 1
        %s203 = smul.addr %s202, 4
        %s204 = scalar_lea.vmem [#allocation5], %s203
        %p205 = pneg %p83
        %p206 = pneg %p80
        %p207 = pneg %p111
        %p208 = pneg %p108
        %s209 = sand.u32 %s98, 1
        %s210 = scalar_lea.sflag [#allocation4], %s209
        %s211 = sand.u32 %s98, 1
        %s212 = smul.addr %s211, 4
        %s213 = scalar_lea.vmem [#allocation7], %s212
        %v215 = vld [vmem:[%s179] sm:$0x3]
        %v216 = vld [vmem:[%s188] sm:$0xf]
        %v217 = vmul.f32 %v215, 2.0
        %v218 = vrcp.pop 15.0
        %v219 = vmul.f32 %v217, %v218
        %v220 = vsub.f32 %v219, 1.0
        %v221 = vadd.f32 %v220, 1.0
        %v222 = vmul.f32 %v221, 16.0
        %v223 = vsub.f32 %v222, 1.0
        %v224 = vmul.f32 %v223, 0.5
        %v225 = vlaneseq
        %v226 = vshrl.u32 %v225, 7
        %v227 = vadd.s32 %v226, 8
        %v228 = vcvt.s32.f32 %v226
        %v229 = vcvt.s32.f32 %v227
        %v230 = vlaneseq
        %v231 = vshrl.u32 %v230, 7
        %v232 = vsub.s32 0, %v231
        %v233 = vrot.slane %v224, %v232
        %v234 = vsub.f32 %v228, %v233
        %v235 = vsub.f32 %v229, %v233
        %v236 = vand.u32 2147483647, %v234
        %v237 = vand.u32 2147483647, %v235
        %vm238 = vcmp.lt.f32.partialorder %v236, 1.0
        %vm239 = vcmp.lt.f32.partialorder %v237, 1.0
        %v240 = vmul.f32 %v236, 1.25
        %v241 = vmul.f32 %v237, 1.25
        %v242 = vsub.f32 %v240, 2.25
        %v243 = vsub.f32 %v241, 2.25
        %v244 = vmul.f32 %v242, %v236
        %v245 = vmul.f32 %v243, %v237
        %v246 = vmul.f32 %v244, %v236
        %v247 = vmul.f32 %v245, %v237
        %v248 = vadd.f32 %v246, 1.0
        %v249 = vadd.f32 %v247, 1.0
        %vm250 = vcmp.lt.f32.partialorder %v236, 2.0
        %vm251 = vcmp.lt.f32.partialorder %v237, 2.0
        %v252 = vmul.f32 %v236, -0.75
        %v253 = vmul.f32 %v237, -0.75
        %v254 = vsub.f32 %v252, -3.75
        %v255 = vsub.f32 %v253, -3.75
        %v256 = vmul.f32 %v254, %v236
        %v257 = vmul.f32 %v255, %v237
        %v258 = vadd.f32 %v256, -6.0
        %v259 = vadd.f32 %v257, -6.0
        %v260 = vmul.f32 %v258, %v236
        %v261 = vmul.f32 %v259, %v237
        %v262 = vsub.f32 %v260, -3.0
        %v263 = vsub.f32 %v261, -3.0
        %v264 = vsel %vm250, %v262, 0.0
        %v265 = vsel %vm251, %v263, 0.0
        %v266 = vsel %vm238, %v248, %v264
        %v267 = vsel %vm239, %v249, %v265
        %v268 = vpack.c.bf16 %v267, %v266
        %v269 = vlaneseq
        %v270 = vshrl.u32 %v269, 7
        %v271 = vsub.s32 1, %v270
        %v272 = vrot.slane %v224, %v271
        %v273 = vsub.f32 %v228, %v272
        %v274 = vsub.f32 %v229, %v272
        %v275 = vand.u32 2147483647, %v273
        %v276 = vand.u32 2147483647, %v274
        %vm277 = vcmp.lt.f32.partialorder %v275, 1.0
        %vm278 = vcmp.lt.f32.partialorder %v276, 1.0
        %v279 = vmul.f32 %v275, 1.25
        %v280 = vmul.f32 %v276, 1.25
        %v281 = vsub.f32 %v279, 2.25
        %v282 = vsub.f32 %v280, 2.25
        %v283 = vmul.f32 %v281, %v275
        %v284 = vmul.f32 %v282, %v276
        %v285 = vmul.f32 %v283, %v275
        %v286 = vmul.f32 %v284, %v276
        %v287 = vadd.f32 %v285, 1.0
        %v288 = vadd.f32 %v286, 1.0
        %vm289 = vcmp.lt.f32.partialorder %v275, 2.0
        %vm290 = vcmp.lt.f32.partialorder %v276, 2.0
        %v291 = vmul.f32 %v275, -0.75
        %v292 = vmul.f32 %v276, -0.75
        %v293 = vsub.f32 %v291, -3.75
        %v294 = vsub.f32 %v292, -3.75
        %v295 = vmul.f32 %v293, %v275
        %v296 = vmul.f32 %v294, %v276
        %v297 = vadd.f32 %v295, -6.0
        %v298 = vadd.f32 %v296, -6.0
        %v299 = vmul.f32 %v297, %v275
        %v300 = vmul.f32 %v298, %v276
        %v301 = vsub.f32 %v299, -3.0
        %v302 = vsub.f32 %v300, -3.0
        %v303 = vsel %vm289, %v301, 0.0
        %v304 = vsel %vm290, %v302, 0.0
        %v305 = vsel %vm277, %v287, %v303
        %v306 = vsel %vm278, %v288, %v304
        %v307 = vpack.c.bf16 %v306, %v305
        %v309 = vcombine.high %v307, %v307
        %v311 = vunpack.c.l.s4 1966171168
        %v312 = vunpack.c.0.s8 %v311
        %v313 = vlaneseq
        %v314 = vshrl.u32 %v313, 7
        %v315 = vsub.s32 %v312, %v314
        %v316 = vrot.slane %v307, %v315
        %v318 = vunpack.c.l.s4 1966171168
        %v319 = vunpack.c.0.s8 %v318
        %v320 = vlaneseq
        %v321 = vshrl.u32 %v320, 7
        %v322 = vsub.s32 %v319, %v321
        %v323 = vrot.slane %v309, %v322
        %v324 = vcombine.high %v316, %v316
        %v325 = vcombine.high %v323, %v323
        %v327 = vunpack.c.l.s4 1966171168
        %v328 = vunpack.c.0.s8 %v327
        %v329 = vlaneseq
        %v330 = vshrl.u32 %v329, 7
        %v331 = vsub.s32 %v328, %v330
        %v332 = vrot.slane %v316, %v331
        %v334 = vunpack.c.l.s4 1966171168
        %v335 = vunpack.c.0.s8 %v334
        %v336 = vlaneseq
        %v337 = vshrl.u32 %v336, 7
        %v338 = vsub.s32 %v335, %v337
        %v339 = vrot.slane %v323, %v338
        %v341 = vunpack.c.l.s4 1966171168
        %v342 = vunpack.c.0.s8 %v341
        %v343 = vlaneseq
        %v344 = vshrl.u32 %v343, 7
        %v345 = vsub.s32 %v342, %v344
        %v346 = vrot.slane %v324, %v345
        %v348 = vunpack.c.l.s4 1966171168
        %v349 = vunpack.c.0.s8 %v348
        %v350 = vlaneseq
        %v351 = vshrl.u32 %v350, 7
        %v352 = vsub.s32 %v349, %v351
        %v353 = vrot.slane %v325, %v352
        %v354 = vcombine.high %v332, %v332
        %v355 = vcombine.high %v339, %v339
        %v356 = vcombine.high %v346, %v346
        %v357 = vcombine.high %v353, %v353
        %v358 = vunpack.i.l.s16 %v332
        %v359 = vunpack.i.h.s16 %v332
        %v360 = vunpack.i.l.s16 %v346
        %v361 = vunpack.i.h.s16 %v346
        %v362 = vunpack.i.l.s16 %v354
        %v363 = vunpack.i.h.s16 %v354
        %v364 = vunpack.i.l.s16 %v356
        %v365 = vunpack.i.h.s16 %v356
        %v366 = vunpack.i.l.s16 %v339
        %v367 = vunpack.i.h.s16 %v339
        %v368 = vunpack.i.l.s16 %v353
        %v369 = vunpack.i.h.s16 %v353
        %v370 = vunpack.i.l.s16 %v355
        %v371 = vunpack.i.h.s16 %v355
        %v372 = vunpack.i.l.s16 %v357
        %v373 = vunpack.i.h.s16 %v357
        %v374 = vpack.i.b16 %v358, %v358
        %v375 = vpack.i.b16 %v359, %v359
        %v376 = vpack.i.b16 %v360, %v360
        %v377 = vpack.i.b16 %v361, %v361
        %v378 = vpack.i.b16 %v362, %v362
        %v379 = vpack.i.b16 %v363, %v363
        %v380 = vpack.i.b16 %v364, %v364
        %v381 = vpack.i.b16 %v365, %v365
        %v382 = vpack.i.b16 %v366, %v366
        %v383 = vpack.i.b16 %v367, %v367
        %v384 = vpack.i.b16 %v368, %v368
        %v385 = vpack.i.b16 %v369, %v369
        %v386 = vpack.i.b16 %v370, %v370
        %v387 = vpack.i.b16 %v371, %v371
        %v388 = vpack.i.b16 %v372, %v372
        %v389 = vpack.i.b16 %v373, %v373
        %v390 = vlaneseq
        %v391 = vshrl.u32 %v390, 7
        %v392 = vsub.s32 0, %v391
        %v393 = vrot.slane %v374, %v392
        %v394 = vlaneseq
        %v395 = vshrl.u32 %v394, 7
        %v396 = vsub.s32 0, %v395
        %v397 = vrot.slane %v375, %v396
        %v398 = vlaneseq
        %v399 = vshrl.u32 %v398, 7
        %v400 = vsub.s32 0, %v399
        %v401 = vrot.slane %v376, %v400
        %v402 = vlaneseq
        %v403 = vshrl.u32 %v402, 7
        %v404 = vsub.s32 0, %v403
        %v405 = vrot.slane %v377, %v404
        %v406 = vlaneseq
        %v407 = vshrl.u32 %v406, 7
        %v408 = vsub.s32 0, %v407
        %v409 = vrot.slane %v378, %v408
        %v410 = vlaneseq
        %v411 = vshrl.u32 %v410, 7
        %v412 = vsub.s32 0, %v411
        %v413 = vrot.slane %v379, %v412
        %v414 = vlaneseq
        %v415 = vshrl.u32 %v414, 7
        %v416 = vsub.s32 0, %v415
        %v417 = vrot.slane %v380, %v416
        %v418 = vlaneseq
        %v419 = vshrl.u32 %v418, 7
        %v420 = vsub.s32 0, %v419
        %v421 = vrot.slane %v381, %v420
        %v422 = vlaneseq
        %v423 = vshrl.u32 %v422, 7
        %v424 = vsub.s32 0, %v423
        %v425 = vrot.slane %v382, %v424
        %v426 = vlaneseq
        %v427 = vshrl.u32 %v426, 7
        %v428 = vsub.s32 0, %v427
        %v429 = vrot.slane %v383, %v428
        %v430 = vlaneseq
        %v431 = vshrl.u32 %v430, 7
        %v432 = vsub.s32 0, %v431
        %v433 = vrot.slane %v384, %v432
        %v434 = vlaneseq
        %v435 = vshrl.u32 %v434, 7
        %v436 = vsub.s32 0, %v435
        %v437 = vrot.slane %v385, %v436
        %v438 = vlaneseq
        %v439 = vshrl.u32 %v438, 7
        %v440 = vsub.s32 0, %v439
        %v441 = vrot.slane %v386, %v440
        %v442 = vlaneseq
        %v443 = vshrl.u32 %v442, 7
        %v444 = vsub.s32 0, %v443
        %v445 = vrot.slane %v387, %v444
        %v446 = vlaneseq
        %v447 = vshrl.u32 %v446, 7
        %v448 = vsub.s32 0, %v447
        %v449 = vrot.slane %v388, %v448
        %v450 = vlaneseq
        %v451 = vshrl.u32 %v450, 7
        %v452 = vsub.s32 0, %v451
        %v453 = vrot.slane %v389, %v452
        %v455 = vpack.i.b16 %v393, %v393
        %v457 = vlaneseq
        %v458 = vshrl.u32 %v457, 7
        %v459 = vsub.s32 0, %v458
        %v460 = vrot.slane %v455, %v459
        %v462 = vpack.i.b16 %v397, %v397
        %v464 = vlaneseq
        %v465 = vshrl.u32 %v464, 7
        %v466 = vsub.s32 0, %v465
        %v467 = vrot.slane %v462, %v466
        %v469 = vpack.i.b16 %v401, %v401
        %v471 = vlaneseq
        %v472 = vshrl.u32 %v471, 7
        %v473 = vsub.s32 0, %v472
        %v474 = vrot.slane %v469, %v473
        %v476 = vpack.i.b16 %v405, %v405
        %v478 = vlaneseq
        %v479 = vshrl.u32 %v478, 7
        %v480 = vsub.s32 0, %v479
        %v481 = vrot.slane %v476, %v480
        %v483 = vpack.i.b16 %v409, %v409
        %v485 = vlaneseq
        %v486 = vshrl.u32 %v485, 7
        %v487 = vsub.s32 0, %v486
        %v488 = vrot.slane %v483, %v487
        %v490 = vpack.i.b16 %v413, %v413
        %v492 = vlaneseq
        %v493 = vshrl.u32 %v492, 7
        %v494 = vsub.s32 0, %v493
        %v495 = vrot.slane %v490, %v494
        %v497 = vpack.i.b16 %v417, %v417
        %v499 = vlaneseq
        %v500 = vshrl.u32 %v499, 7
        %v501 = vsub.s32 0, %v500
        %v502 = vrot.slane %v497, %v501
        %v504 = vpack.i.b16 %v421, %v421
        %v506 = vlaneseq
        %v507 = vshrl.u32 %v506, 7
        %v508 = vsub.s32 0, %v507
        %v509 = vrot.slane %v504, %v508
        %v511 = vpack.i.b16 %v425, %v425
        %v513 = vlaneseq
        %v514 = vshrl.u32 %v513, 7
        %v515 = vsub.s32 0, %v514
        %v516 = vrot.slane %v511, %v515
        %v518 = vpack.i.b16 %v429, %v429
        %v520 = vlaneseq
        %v521 = vshrl.u32 %v520, 7
        %v522 = vsub.s32 0, %v521
        %v523 = vrot.slane %v518, %v522
        %v525 = vpack.i.b16 %v433, %v433
        %v527 = vlaneseq
        %v528 = vshrl.u32 %v527, 7
        %v529 = vsub.s32 0, %v528
        %v530 = vrot.slane %v525, %v529
        %v532 = vpack.i.b16 %v437, %v437
        %v534 = vlaneseq
        %v535 = vshrl.u32 %v534, 7
        %v536 = vsub.s32 0, %v535
        %v537 = vrot.slane %v532, %v536
        %v539 = vpack.i.b16 %v441, %v441
        %v541 = vlaneseq
        %v542 = vshrl.u32 %v541, 7
        %v543 = vsub.s32 0, %v542
        %v544 = vrot.slane %v539, %v543
        %v546 = vpack.i.b16 %v445, %v445
        %v548 = vlaneseq
        %v549 = vshrl.u32 %v548, 7
        %v550 = vsub.s32 0, %v549
        %v551 = vrot.slane %v546, %v550
        %v553 = vpack.i.b16 %v449, %v449
        %v555 = vlaneseq
        %v556 = vshrl.u32 %v555, 7
        %v557 = vsub.s32 0, %v556
        %v558 = vrot.slane %v553, %v557
        %v560 = vpack.i.b16 %v453, %v453
        %v562 = vlaneseq
        %v563 = vshrl.u32 %v562, 7
        %v564 = vsub.s32 0, %v563
        %v565 = vrot.slane %v560, %v564
        %v566 = vmul.bf16 %v460, %v268
        %v567 = vmul.bf16 %v467, %v268
        %v568 = vmul.bf16 %v474, %v268
        %v569 = vmul.bf16 %v481, %v268
        %v570 = vmul.bf16 %v488, %v268
        %v571 = vmul.bf16 %v495, %v268
        %v572 = vmul.bf16 %v502, %v268
        %v573 = vmul.bf16 %v509, %v268
        %v574 = vmul.bf16 %v516, %v268
        %v575 = vmul.bf16 %v523, %v268
        %v576 = vmul.bf16 %v530, %v268
        %v577 = vmul.bf16 %v537, %v268
        %v578 = vmul.bf16 %v544, %v268
        %v579 = vmul.bf16 %v551, %v268
        %v580 = vmul.bf16 %v558, %v268
        %v581 = vmul.bf16 %v565, %v268
        %v584 = vunpack.c.l.s4 1983009808
        %v585 = vunpack.c.0.s8 %v584
        %v586 = vlaneseq
        %v587 = vshrl.u32 %v586, 7
        %v588 = vsub.s32 %v585, %v587
        %v589 = vrot.slane %v216, %v588
        %v590 = vcombine.high %v589, %v589
        %593 = vmatprep.subr.bf16.mxu0 0
        %594 = vmatpush1.bf16.msra.mxu0 %v566
        %595 = vmatprep.subr.bf16.mxu0 0
        %596 = vmatpush1.bf16.msra.mxu0 %v567
        %597 = vmatprep.subr.bf16.mxu0 0
        %598 = vmatpush1.bf16.msra.mxu0 %v568
        %599 = vmatprep.subr.bf16.mxu0 0
        %600 = vmatpush1.bf16.msra.mxu0 %v569
        %601 = vmatprep.subr.bf16.mxu0 0
        %602 = vmatpush1.bf16.msra.mxu0 %v570
        %603 = vmatprep.subr.bf16.mxu0 0
        %604 = vmatpush1.bf16.msra.mxu0 %v571
        %605 = vmatprep.subr.bf16.mxu0 0
        %606 = vmatpush1.bf16.msra.mxu0 %v572
        %607 = vmatprep.subr.bf16.mxu0 0
        %608 = vmatpush1.bf16.msra.mxu0 %v573
        %609 = vmatprep.subr.bf16.mxu0 0
        %610 = vmatpush1.bf16.msra.mxu0 %v574
        %611 = vmatprep.subr.bf16.mxu0 0
        %612 = vmatpush1.bf16.msra.mxu0 %v575
        %613 = vmatprep.subr.bf16.mxu0 0
        %614 = vmatpush1.bf16.msra.mxu0 %v576
        %615 = vmatprep.subr.bf16.mxu0 0
        %616 = vmatpush1.bf16.msra.mxu0 %v577
        %617 = vmatprep.subr.bf16.mxu0 0
        %618 = vmatpush1.bf16.msra.mxu0 %v578
        %619 = vmatprep.subr.bf16.mxu0 0
        %620 = vmatpush1.bf16.msra.mxu0 %v579
        %621 = vmatprep.subr.bf16.mxu0 0
        %622 = vmatpush1.bf16.msra.mxu0 %v580
        %623 = vmatprep.subr.bf16.mxu0 0
        %624 = vmatpush1.bf16.msra.mxu0 %v581
        %625 = vmatprep.mubr.bf16.mxu0 %v590
        %626 = vmatmul.mubr.bf16.gmra.mrb[0].mxu0 %v589
        %v627 = vpop.f32.mrb[0].mxu0
        %v628 = vadd.f32 0.0, %v627
        %v629 = vpop.f32.mrb[0].mxu0
        %v630 = vpop.f32.mrb[0].mxu0
        %v631 = vpop.f32.mrb[0].mxu0
        %632 = vdwg.mxu0
        %633 = vst [vmem:[%s213] sm:$0xf] %v628
        %s634 = sand.u32 %s98, 1
        %s635 = scalar_lea.sflag [#allocation4], %s634
        %s636 = sand.u32 %s98, 1
        %s637 = smul.addr %s636, 4
        %s638 = scalar_lea.vmem [#allocation7], %s637
        // Predicated region
        $region37: #{tpu_custom_call.1} parent=27 // pred_check
          %p639 = pneg %p108
        $region38: #{tpu_custom_call.1} parent=27 // pred_check_branch
          %641 = sbr.rel (%p639) target = $region40
        $region39: #{tpu_custom_call.1} parent=27 // pred_region
          %s643 = ssub.s32 64, 64
          %644 = vsyncadd %s635, %s643
          %s645 = sadd.s32 %s27, %s26
          %s646 = smul.addr %s645, 64
          %s647 = scalar_lea.hbm %s2, %s646
          %s649 = sshll.u32 %s638, 4
          %s650 = int_to_ptr.vmem [resolvable:$true] %s649
          %652 = dma.vmem_to_hbm [thread:$0]  %s650, 64, %s647, %s635
        $region40: #{tpu_custom_call.1} parent=27 // pred_fallthru
          _
      $region28: #{tpu_custom_call.1} parent=5 // pred_fallthru
        _
      %p653 = scmp.le.s32.totalorder 2, %s17
      // Predicated region
      $region41: #{tpu_custom_call.1} parent=5 // pred_check
        %p654 = pneg %p653
      $region42: #{tpu_custom_call.1} parent=5 // pred_check_branch
        %656 = sbr.rel (%p654) target = $region44
      $region43: #{tpu_custom_call.1} parent=5 // pred_region
        %s657 = ssub.s32 %s17, 2
        // Predicated region
        $region45: #{tpu_custom_call.1} parent=43 // pred_check
          %p658 = pneg %p114
        $region46: #{tpu_custom_call.1} parent=43 // pred_check_branch
          %660 = sbr.rel (%p658) target = $region48
        $region47: #{tpu_custom_call.1} parent=43 // pred_region
          %s661 = sand.u32 %s99, 1
          %s662 = scalar_lea.sflag [#allocation4], %s661
          %s663 = sand.u32 %s99, 1
          %s664 = smul.addr %s663, 4
          %s665 = scalar_lea.vmem [#allocation7], %s664
          %666 = dma.done %s662, 64
        $region48: #{tpu_custom_call.1} parent=43 // pred_fallthru
          _
      $region44: #{tpu_custom_call.1} parent=5 // pred_fallthru
        _
    $region6: #{tpu_custom_call.1} parent=1 // loop_footer
      %s21 = sadd.s32 1, %s17
    $region7: #{tpu_custom_call.1} parent=1 // loop_footer_branch
      %16 = sbr.rel target = $region3
    $region8: #{tpu_custom_call.1} parent=1 // loop_exit
      _
    %667 = vsyncpa [#allocation3], 1
    %s668 = scalar_lea.sflag [#allocation3], 1
    %669 = vsyncpa %s668, 1
    %670 = vsyncpa [#allocation6], 1
    %s671 = scalar_lea.sflag [#allocation6], 1
    %672 = vsyncpa %s671, 1
    %673 = vsyncpa [#allocation4], 1
    %s674 = scalar_lea.sflag [#allocation4], 1
    %675 = vsyncpa %s674, 1

</llo_original>
